<compile_context>
chip_gen: v7x
topology: tpu7x:2x2x1
jax: 0.10.0
libtpu: 0.0.40
codegen_flags: <defaults>
</compile_context>

<pallas_src>
import jax
import jax.numpy as jnp
from jax.experimental import pallas as pl
from jax.experimental.pallas import tpu as pltpu

OUT_DIM = 2
K5 = 5            # conv kernel size
PAD = 2           # conv padding
_LANE = 128
_VMEM_LIMIT = 48 * 1024 * 1024   # explicit scoped-VMEM budget (ok on v5e/v6e/v7x)


def _round_up(n, m):
    return (n + m - 1) // m * m


def _pick_tk(K, cap=4096):
    """Largest multiple-of-128 divisor of K that is <= cap (never pad K)."""
    if K <= cap:
        return K
    for cand in range(cap - cap % _LANE, 0, -_LANE):
        if K % cand == 0:
            return cand
    return K  # no aligned divisor found: single (large) K step, still no padding


# ---------------------------------------------------------------------------
# Kernel 1: generic fused  out = PReLU(A @ B + bias) [+ residual]
#   grid = (M_tiles, K_tiles); f32 accumulator in VMEM scratch; bf16 operands.
# ---------------------------------------------------------------------------
def _make_matmul_kernel(has_res):
    def kernel(*refs):
        if has_res:
            a_ref, b_ref, bias_ref, al_ref, r_ref, o_ref, acc_ref = refs
        else:
            a_ref, b_ref, bias_ref, al_ref, o_ref, acc_ref = refs
            r_ref = None

        @pl.when(pl.program_id(1) == 0)
        def _():
            acc_ref[...] = jnp.zeros_like(acc_ref)

        acc_ref[...] += jnp.dot(a_ref[...], b_ref[...],
                                preferred_element_type=jnp.float32)

        @pl.when(pl.program_id(1) == pl.num_programs(1) - 1)
        def _():
            y = acc_ref[...] + bias_ref[...]
            alpha = al_ref[0]
            y = jnp.where(y >= 0.0, y, alpha * y)        # PReLU (shared alpha)
            if has_res:
                y = y + r_ref[...].astype(jnp.float32)   # residual added post-PReLU
            o_ref[...] = y.astype(o_ref.dtype)

    return kernel


def fused_matmul_prelu(a, b, bias, alpha, residual=None, *,
                       out_dtype=jnp.bfloat16, tk_cap=4096, tm_cap=1024):
    """out = PReLU(a @ b + bias) [+ residual], lane-dense (N padded to 128)."""
    M, K = a.shape
    N = b.shape[1]
    Np = _round_up(N, _LANE)

    a = a.astype(jnp.bfloat16)
    b = jnp.pad(b, ((0, 0), (0, Np - N))).astype(jnp.bfloat16)
    bias = jnp.pad(bias, (0, Np - N)).reshape(1, Np).astype(jnp.float32)
    al = jnp.asarray(alpha, jnp.float32).reshape(1)

    tm = tm_cap if (M > tm_cap and M % tm_cap == 0) else M
    tk = _pick_tk(K, tk_cap)

    has_res = residual is not None
    operands = [a, b, bias, al]
    in_specs = [
        pl.BlockSpec((tm, tk), lambda i, k: (i, k)),                 # A tile
        pl.BlockSpec((tk, Np), lambda i, k: (k, 0)),                 # B tile
        pl.BlockSpec((1, Np), lambda i, k: (0, 0)),                  # bias (resident)
        pl.BlockSpec(memory_space=pltpu.MemorySpace.SMEM),           # PReLU alpha
    ]
    if has_res:
        r = jnp.pad(residual.astype(jnp.bfloat16), ((0, 0), (0, Np - N)))
        operands.append(r)
        in_specs.append(pl.BlockSpec((tm, Np), lambda i, k: (i, 0)))

    out = pl.pallas_call(
        _make_matmul_kernel(has_res),
        out_shape=jax.ShapeDtypeStruct((M, Np), out_dtype),
        grid_spec=pltpu.PrefetchScalarGridSpec(
            num_scalar_prefetch=0,
            grid=(M // tm, K // tk),
            in_specs=in_specs,
            out_specs=pl.BlockSpec((tm, Np), lambda i, k: (i, 0)),
            scratch_shapes=[pltpu.VMEM((tm, Np), jnp.float32)],
        ),
        compiler_params=pltpu.CompilerParams(
            dimension_semantics=("parallel", "arbitrary"),
            vmem_limit_bytes=_VMEM_LIMIT),
    )(*operands)
    return out if Np == N else out[:, :N]


# ---------------------------------------------------------------------------
# Kernel 2: 5x5x5 "tap" conv kernel.
#   HBM holds a W-folded slab  xcol[(d_pad, h_pad, n*W+w, kw*C+c)]  (5x input, not
#   125x im2col).  The whole slab + all 25 (kd,kh) weight matrices stay resident in
#   VMEM; the kernel statically unrolls the 25 taps, slicing shifted windows along
#   the leading (untiled) D/H axes and accumulating bf16 matmuls into an f32 acc.
#   Grid = (D // td,) "parallel" tiles over output depth.
# ---------------------------------------------------------------------------
def _make_conv_tap_kernel(td, H, NW, has_res):
    Mt = td * H * NW

    def kernel(*refs):
        if has_res:
            x_ref, w_ref, bias_ref, al_ref, r_ref, o_ref, acc_ref = refs
        else:
            x_ref, w_ref, bias_ref, al_ref, o_ref, acc_ref = refs
            r_ref = None

        d0 = pl.program_id(0) * td
        acc_ref[...] = jnp.zeros_like(acc_ref)
        for t in range(K5 * K5):                       # 25 (kd, kh) tap pairs
            kd, kh = divmod(t, K5)
            a = x_ref[pl.ds(d0 + kd, td), kh:kh + H, :, :]   # (td, H, NW, 5*C)
            a = a.reshape(Mt, a.shape[-1])                   # NW % 16 == 0 -> free
            acc_ref[...] += jnp.dot(a, w_ref[t],
                                    preferred_element_type=jnp.float32)

        y = acc_ref[...] + bias_ref[...]
        alpha = al_ref[0]
        y = jnp.where(y >= 0.0, y, alpha * y)
        if has_res:
            y = y + r_ref[...].astype(jnp.float32)
        o_ref[...] = y.astype(o_ref.dtype)

    return kernel


def _conv5x5_tap(x, p, residual):
    """x: (D, H, N, W, C) internal layout.  Requires (N*W) % 16 == 0."""
    D, H, Nb, W, C = x.shape
    w, b, alpha = p["w"], p["b"], p["alpha"]           # w: (5,5,5,Cin,Cout)
    Cout = w.shape[-1]
    Coutp = _round_up(Cout, _LANE)
    NW = Nb * W
    K5C = K5 * C
    M = D * H * NW
    td = 4 if D % 4 == 0 else D
    Mt = td * H * NW
    Dp, Hp = D + 2 * PAD, H + 2 * PAD

    xb = x.astype(jnp.bfloat16)
    xp = jnp.pad(xb, ((PAD, PAD), (PAD, PAD), (0, 0), (PAD, PAD), (0, 0)))
    # Fold the 5 W-direction taps into the lane (channel) dim: 5x HBM, not 125x.
    xcol = jnp.concatenate([xp[:, :, :, kw:kw + W, :] for kw in range(K5)], axis=-1)
    xcol = xcol.reshape(Dp, Hp, NW, K5C)

    wt = w.reshape(K5, K5, K5C, Cout)                  # (kd, kh, kw*C+c, co)
    wt = jnp.pad(wt, ((0, 0), (0, 0), (0, 0), (0, Coutp - Cout)))
    wt = wt.reshape(K5 * K5, K5C, Coutp).astype(jnp.bfloat16)

    bias = jnp.pad(b, (0, Coutp - Cout)).reshape(1, Coutp).astype(jnp.float32)
    al = jnp.asarray(alpha, jnp.float32).reshape(1)

    has_res = residual is not None
    operands = [xcol, wt, bias, al]
    in_specs = [
        pl.BlockSpec((Dp, Hp, NW, K5C), lambda i: (0, 0, 0, 0)),    # resident slab
        pl.BlockSpec((K5 * K5, K5C, Coutp), lambda i: (0, 0, 0)),   # resident weights
        pl.BlockSpec((1, Coutp), lambda i: (0, 0)),                 # bias
        pl.BlockSpec(memory_space=pltpu.MemorySpace.SMEM),          # alpha
    ]
    if has_res:
        r = jnp.pad(residual.reshape(M, Cout).astype(jnp.bfloat16),
                    ((0, 0), (0, Coutp - Cout)))
        operands.append(r)
        in_specs.append(pl.BlockSpec((Mt, Coutp), lambda i: (i, 0)))

    out = pl.pallas_call(
        _make_conv_tap_kernel(td, H, NW, has_res),
        out_shape=jax.ShapeDtypeStruct((M, Coutp), jnp.bfloat16),
        grid_spec=pltpu.PrefetchScalarGridSpec(
            num_scalar_prefetch=0,
            grid=(D // td,),
            in_specs=in_specs,
            out_specs=pl.BlockSpec((Mt, Coutp), lambda i: (i, 0)),
            scratch_shapes=[pltpu.VMEM((Mt, Coutp), jnp.float32)],
        ),
        compiler_params=pltpu.CompilerParams(
            dimension_semantics=("parallel",),
            vmem_limit_bytes=_VMEM_LIMIT),
    )(*operands)
    return out[:, :Cout].reshape(D, H, Nb, W, Cout)


def _conv5x5_im2col(x, p, residual):
    """Fallback for tiny spatial extents: bf16 im2col + fused matmul kernel."""
    D, H, Nb, W, C = x.shape
    w, b, alpha = p["w"], p["b"], p["alpha"]
    Cout = w.shape[-1]
    xb = x.astype(jnp.bfloat16)
    xp = jnp.pad(xb, ((PAD, PAD), (PAD, PAD), (0, 0), (PAD, PAD), (0, 0)))
    cols = [xp[kd:kd + D, kh:kh + H, :, kw:kw + W, :]
            for kd in range(K5) for kh in range(K5) for kw in range(K5)]
    a = jnp.stack(cols, axis=4).reshape(D * H * Nb * W, K5 ** 3 * C)
    wf = w.reshape(K5 ** 3 * C, Cout)
    res = None if residual is None else residual.reshape(D * H * Nb * W, Cout)
    y = fused_matmul_prelu(a, wf, b, alpha, residual=res)
    return y.reshape(D, H, Nb, W, Cout)


# ---------------------------------------------------------------------------
# Layer wrappers (internal activation layout: (D, H, N, W, C), channels on lanes)
# ---------------------------------------------------------------------------
def conv3d_5x5_prelu(x, p, residual=None):
    """Conv3d(k=5, s=1, pad=2) + PReLU (+ fused residual add)."""
    D, H, Nb, W, _ = x.shape
    if (Nb * W) % 16 == 0:        # tile-aligned in-kernel row merge (bf16 sublanes)
        return _conv5x5_tap(x, p, residual)
    return _conv5x5_im2col(x, p, residual)


def convtranspose3d_2x2_prelu(x, p):
    """ConvTranspose3d(k=2, s=2, pad=0) + PReLU, as an exact matmul."""
    D, H, Nb, W, Cin = x.shape
    w, b, alpha = p["w"], p["b"], p["alpha"]           # w: (Cin, 2, 2, 2, Cout)
    Cout = w.shape[-1]
    a = x.reshape(D * H * Nb * W, Cin)
    wf = w.reshape(Cin, 8 * Cout)                      # 8*Cout is already 128-aligned
    bf = jnp.tile(b, 8)
    y = fused_matmul_prelu(a, wf, bf, alpha)
    y = y.reshape(D, H, Nb, W, 2, 2, 2, Cout)
    # TODO(synk): interleaved (2D,2H,2W) writeback could be folded into the kernel
    # out_spec; kept as a tiny XLA transpose since these tensors are small.
    y = y.transpose(0, 4, 1, 5, 2, 3, 6, 7).reshape(2 * D, 2 * H, Nb, 2 * W, Cout)
    return y


def conv3d_1x1_prelu(x, p, out_dtype=jnp.float32):
    D, H, Nb, W, Cin = x.shape
    y = fused_matmul_prelu(x.reshape(-1, Cin), p["w"], p["b"], p["alpha"],
                           out_dtype=out_dtype)
    return y.reshape(D, H, Nb, W, -1)


# ---------------------------------------------------------------------------
# DecompressionPath forward (mirrors the PyTorch forward())
# ---------------------------------------------------------------------------
def decompression_path_forward(params, enc_out, stage_outputs):
    # External interface is NDHWC; internal layout is (D, H, N, W, C), bf16.
    def to_internal(t):
        return jnp.transpose(t, (1, 2, 0, 3, 4)).astype(jnp.bfloat16)

    x = to_internal(enc_out)
    skips = [to_internal(s) for s in stage_outputs]

    u1 = convtranspose3d_2x2_prelu(x, params["up1"])                 # id1 (unused, as in ref)
    h1 = jnp.concatenate([u1, skips[-1]], axis=-1)
    h1 = conv3d_5x5_prelu(h1, params["conv1"][0])
    h1 = conv3d_5x5_prelu(h1, params["conv1"][1])
    h1 = conv3d_5x5_prelu(h1, params["conv1"][2])

    u2 = convtranspose3d_2x2_prelu(h1, params["up2"])                # id2
    h2 = jnp.concatenate([u2, skips[-2]], axis=-1)
    h2 = conv3d_5x5_prelu(h2, params["conv2"][0])
    h2 = conv3d_5x5_prelu(h2, params["conv2"][1])
    h2 = conv3d_5x5_prelu(h2, params["conv2"][2], residual=u2)       # h2 = conv2(h2) + id2

    u3 = convtranspose3d_2x2_prelu(h2, params["up3"])                # id3
    h3 = jnp.concatenate([u3, skips[-3]], axis=-1)
    h3 = conv3d_5x5_prelu(h3, params["conv3"][0])
    h3 = conv3d_5x5_prelu(h3, params["conv3"][1], residual=u3)       # h3 = conv3(h3) + id3

    u4 = convtranspose3d_2x2_prelu(h3, params["up4"])                # id4
    h4 = jnp.concatenate([u4, skips[-4]], axis=-1)
    h4 = conv3d_5x5_prelu(h4, params["conv4"][0], residual=u4)       # h4 = conv4(h4) + id4

    out = conv3d_1x1_prelu(h4, params["conv5"])                      # f32 logits
    return jnp.transpose(out, (2, 0, 1, 3, 4))                       # back to NDHWC


# ---------------------------------------------------------------------------
# Deterministic parameter init (shapes per __init__, widths made consistent)
# ---------------------------------------------------------------------------
def init_params(key):
    keys = iter(jax.random.split(key, 64))

    def dense(shape, scale=0.02):
        return scale * jax.random.normal(next(keys), shape, jnp.float32)

    def prelu_alpha():
        return jnp.float32(0.25)        # nn.PReLU() default init

    def up(cin, cout):
        return {"w": dense((cin, 2, 2, 2, cout)), "b": dense((cout,), 0.01),
                "alpha": prelu_alpha()}

    def c5(cin, cout):
        return {"w": dense((5, 5, 5, cin, cout)), "b": dense((cout,), 0.01),
                "alpha": prelu_alpha()}

    return {
        "up1": up(256, 128),
        "conv1": [c5(256, 256), c5(256, 256), c5(256, 128)],
        "up2": up(128, 64),
        "conv2": [c5(128, 128), c5(128, 128), c5(128, 64)],
        "up3": up(64, 32),
        "conv3": [c5(64, 64), c5(64, 32)],
        "up4": up(32, 16),
        "conv4": [c5(32, 16)],
        "conv5": {"w": dense((16, OUT_DIM)), "b": dense((OUT_DIM,), 0.01),
                  "alpha": prelu_alpha()},
    }


# ---------------------------------------------------------------------------
# Pure-jnp references for self-checks (bf16-cast operands, f32 accumulation)
# ---------------------------------------------------------------------------
def _conv5_reference(x, p, residual=None):
    D, H, Nb, W, C = x.shape
    w, b, alpha = p["w"], p["b"], p["alpha"]
    Cout = w.shape[-1]
    xf = x.astype(jnp.bfloat16).astype(jnp.float32)
    wf = w.astype(jnp.bfloat16).astype(jnp.float32)
    xp = jnp.pad(xf, ((PAD, PAD), (PAD, PAD), (0, 0), (PAD, PAD), (0, 0)))
    cols = [xp[kd:kd + D, kh:kh + H, :, kw:kw + W, :]
            for kd in range(K5) for kh in range(K5) for kw in range(K5)]
    a = jnp.stack(cols, axis=4).reshape(D * H * Nb * W, K5 ** 3 * C)
    y = jnp.dot(a, wf.reshape(K5 ** 3 * C, Cout),
                precision=jax.lax.Precision.HIGHEST) + b[None, :]
    y = jnp.where(y >= 0.0, y, alpha * y)
    if residual is not None:
        y = y + residual.astype(jnp.bfloat16).astype(jnp.float32).reshape(-1, Cout)
    return y.reshape(D, H, Nb, W, Cout)


if __name__ == "__main__":
    key = jax.random.PRNGKey(0)
    k_params, k_enc, k1, k2, k3, k4, k_chk = jax.random.split(key, 7)
    params = init_params(k_params)

    B = 2
    # enc_out: bottleneck (256 ch); stage_outputs: encoder skips (16/32/64/128 ch)
    enc_out = 0.1 * jax.random.normal(k_enc, (B, 1, 1, 1, 256), jnp.float32)
    stage_outputs = [
        0.1 * jax.random.normal(k1, (B, 16, 16, 16, 16), jnp.float32),
        0.1 * jax.random.normal(k2, (B, 8, 8, 8, 32), jnp.float32),
        0.1 * jax.random.normal(k3, (B, 4, 4, 4, 64), jnp.float32),
        0.1 * jax.random.normal(k4, (B, 2, 2, 2, 128), jnp.float32),
    ]

    # --- check 1: fused matmul kernel vs bf16-matched jnp reference ----------
    ka, kb, kc, kd_ = jax.random.split(k_chk, 4)
    a = jax.random.normal(ka, (16, 256), jnp.float32)
    bmat = jax.random.normal(kb, (256, 64), jnp.float32)
    bias = jax.random.normal(kc, (64,), jnp.float32)
    res = jax.random.normal(kd_, (16, 64), jnp.float32)
    got = fused_matmul_prelu(a, bmat, bias, jnp.float32(0.25), residual=res,
                             out_dtype=jnp.float32)
    af = a.astype(jnp.bfloat16).astype(jnp.float32)
    bf_ = bmat.astype(jnp.bfloat16).astype(jnp.float32)
    ref = jnp.dot(af, bf_, precision=jax.lax.Precision.HIGHEST) + bias[None, :]
    ref = jnp.where(ref >= 0, ref, 0.25 * ref)
    ref = ref + res.astype(jnp.bfloat16).astype(jnp.float32)
    assert jnp.allclose(got, ref, atol=1e-2, rtol=1e-2), "matmul kernel mismatch"

    # --- check 2: tap-based 5x5x5 conv kernel vs jnp im2col reference --------
    kx, kw_, kbias, kres = jax.random.split(jax.random.fold_in(k_chk, 1), 4)
    xc = 0.5 * jax.random.normal(kx, (8, 8, 2, 8, 64), jnp.float32)   # (D,H,N,W,C)
    pc = {"w": 0.05 * jax.random.normal(kw_, (5, 5, 5, 64, 64), jnp.float32),
          "b": 0.1 * jax.random.normal(kbias, (64,), jnp.float32),
          "alpha": jnp.float32(0.25)}
    rc = 0.5 * jax.random.normal(kres, (8, 8, 2, 8, 64), jnp.float32)
    got_c = conv3d_5x5_prelu(xc, pc, residual=rc).astype(jnp.float32)
    ref_c = _conv5_reference(xc, pc, residual=rc)
    assert jnp.allclose(got_c, ref_c, atol=5e-2, rtol=5e-2), "conv tap kernel mismatch"

    # --- full forward --------------------------------------------------------
    fwd = jax.jit(decompression_path_forward)
    out = fwd(params, enc_out, stage_outputs)
    jax.block_until_ready(out)
    assert out.shape == (B, 16, 16, 16, OUT_DIM)
    assert bool(jnp.all(jnp.isfinite(out)))
    print("KERNEL_OK")
</pallas_src>

<mosaic_0001>
module attributes {stable_mosaic.version = 11 : i64} {
  func.func @kernel(%arg0: i32, %arg1: i32, %arg2: memref<16x256xbf16, #tpu.memory_space<vmem>>, %arg3: memref<256x128xbf16, #tpu.memory_space<vmem>>, %arg4: memref<1x128xf32, #tpu.memory_space<vmem>>, %arg5: memref<1xf32, #tpu.memory_space<smem>>, %arg6: memref<16x128xbf16, #tpu.memory_space<vmem>>, %arg7: memref<16x128xf32, #tpu.memory_space<vmem>>, %arg8: memref<16x128xf32, #tpu.memory_space<vmem>>) attributes {dimension_semantics = [#tpu.dimension_semantics<parallel>, #tpu.dimension_semantics<arbitrary>], iteration_bounds = array<i64: 1, 1>, scalar_prefetch = 0 : i64, scratch_operands = 1 : i64, tpu.core_type = #tpu.core_type<tc>, window_params = [{transform_indices = @transform_0, window_bounds = array<i64: 16, 256>}, {transform_indices = @transform_1, window_bounds = array<i64: 256, 128>}, {pipeline_mode = #tpu.pipeline_mode<synchronous>, transform_indices = @transform_2, window_bounds = array<i64: 1, 128>}, {transform_indices = @transform_3, window_bounds = array<i64: 1>}, {transform_indices = @transform_4, window_bounds = array<i64: 16, 128>}, {transform_indices = @transform_5, window_bounds = array<i64: 16, 128>}]} {
    %c0_i32 = arith.constant 0 : i32
    %0 = arith.cmpi eq, %arg1, %c0_i32 : i32
    %1 = arith.extui %0 : i1 to i32
    %c0_i32_0 = arith.constant 0 : i32
    %2 = arith.cmpi ne, %1, %c0_i32_0 : i32
    scf.if %2 {
      %cst_10 = arith.constant 0.000000e+00 : f32
      %12 = vector.broadcast %cst_10 : f32 to vector<16x128xf32>
      %c0_11 = arith.constant 0 : index
      %c0_12 = arith.constant 0 : index
      %13 = vector.load %arg8[%c0_11, %c0_12] : memref<16x128xf32, #tpu.memory_space<vmem>>, vector<16x128xf32>
      tpu.vector_store %arg8[%c0_11, %c0_12], %12 {strides = array<i32>} : memref<16x128xf32, #tpu.memory_space<vmem>>, vector<16x128xf32>,
    } else {
    }
    %c0 = arith.constant 0 : index
    %c0_1 = arith.constant 0 : index
    %3 = vector.load %arg8[%c0, %c0_1] : memref<16x128xf32, #tpu.memory_space<vmem>>, vector<16x128xf32>
    %c0_2 = arith.constant 0 : index
    %c0_3 = arith.constant 0 : index
    %4 = vector.load %arg2[%c0_2, %c0_3] : memref<16x256xbf16, #tpu.memory_space<vmem>>, vector<16x256xbf16>
    %c0_4 = arith.constant 0 : index
    %c0_5 = arith.constant 0 : index
    %5 = vector.load %arg3[%c0_4, %c0_5] : memref<256x128xbf16, #tpu.memory_space<vmem>>, vector<256x128xbf16>
    %cst = arith.constant dense<0.000000e+00> : vector<16x128xf32>
    %6 = tpu.matmul %4, %5, %cst {dimension_numbers = #tpu.dot_dimension_numbers<[1], [0], [0], [1], [0, 0, 1, 1], [], []>} : vector<16x256xbf16>, vector<256x128xbf16>, vector<16x128xf32> -> vector<16x128xf32>
    %7 = arith.addf %3, %6 : vector<16x128xf32>
    %c0_6 = arith.constant 0 : index
    %c0_7 = arith.constant 0 : index
    %8 = vector.load %arg8[%c0_6, %c0_7] : memref<16x128xf32, #tpu.memory_space<vmem>>, vector<16x128xf32>
    tpu.vector_store %arg8[%c0_6, %c0_7], %7 {strides = array<i32>} : memref<16x128xf32, #tpu.memory_space<vmem>>, vector<16x128xf32>,
    %c0_i32_8 = arith.constant 0 : i32
    %9 = arith.cmpi eq, %arg1, %c0_i32_8 : i32
    %10 = arith.extui %9 : i1 to i32
    %c0_i32_9 = arith.constant 0 : i32
    %11 = arith.cmpi ne, %10, %c0_i32_9 : i32
    scf.if %11 {
      %c0_10 = arith.constant 0 : index
      %c0_11 = arith.constant 0 : index
      %12 = vector.load %arg8[%c0_10, %c0_11] : memref<16x128xf32, #tpu.memory_space<vmem>>, vector<16x128xf32>
      %c0_12 = arith.constant 0 : index
      %c0_13 = arith.constant 0 : index
      %13 = vector.load %arg4[%c0_12, %c0_13] : memref<1x128xf32, #tpu.memory_space<vmem>>, vector<1x128xf32>
      %14 = vector.broadcast %13 : vector<1x128xf32> to vector<16x128xf32>
      %15 = arith.addf %12, %14 : vector<16x128xf32>
      %c0_14 = arith.constant 0 : index
      %16 = memref.load %arg5[%c0_14] : memref<1xf32, #tpu.memory_space<smem>>
      %cst_15 = arith.constant 0.000000e+00 : f32
      %17 = vector.broadcast %cst_15 : f32 to vector<16x128xf32>
      %18 = arith.cmpf oge, %15, %17 : vector<16x128xf32>
      %19 = vector.broadcast %16 : f32 to vector<16x128xf32>
      %20 = arith.mulf %19, %15 : vector<16x128xf32>
      %21 = arith.select %18, %15, %20 : vector<16x128xi1>, vector<16x128xf32>
      %c0_16 = arith.constant 0 : index
      %c0_17 = arith.constant 0 : index
      %22 = vector.load %arg6[%c0_16, %c0_17] : memref<16x128xbf16, #tpu.memory_space<vmem>>, vector<16x128xbf16>
      %23 = arith.extf %22 : vector<16x128xbf16> to vector<16x128xf32>
      %24 = arith.addf %21, %23 : vector<16x128xf32>
      %c0_18 = arith.constant 0 : index
      %c0_19 = arith.constant 0 : index
      %25 = vector.load %arg7[%c0_18, %c0_19] : memref<16x128xf32, #tpu.memory_space<vmem>>, vector<16x128xf32>
      tpu.vector_store %arg7[%c0_18, %c0_19], %24 {strides = array<i32>} : memref<16x128xf32, #tpu.memory_space<vmem>>, vector<16x128xf32>,
    } else {
    }
    return
  }
  func.func @transform_0(%arg0: i32, %arg1: i32) -> (i32, i32) {
    %c0_i32 = arith.constant 0 : i32
    return %arg0, %arg1 : i32, i32
  }
  func.func @transform_1(%arg0: i32, %arg1: i32) -> (i32, i32) {
    %c0_i32 = arith.constant 0 : i32
    %c0_i32_0 = arith.constant 0 : i32
    return %arg1, %c0_i32 : i32, i32
  }
  func.func @transform_2(%arg0: i32, %arg1: i32) -> (i32, i32) {
    %c0_i32 = arith.constant 0 : i32
    %c0_i32_0 = arith.constant 0 : i32
    %c0_i32_1 = arith.constant 0 : i32
    return %c0_i32, %c0_i32_0 : i32, i32
  }
  func.func @transform_3(%arg0: i32, %arg1: i32) -> i32 {
    %c0_i32 = arith.constant 0 : i32
    %c0_i32_0 = arith.constant 0 : i32
    return %c0_i32 : i32
  }
  func.func @transform_4(%arg0: i32, %arg1: i32) -> (i32, i32) {
    %c0_i32 = arith.constant 0 : i32
    %c0_i32_0 = arith.constant 0 : i32
    return %arg0, %c0_i32 : i32, i32
  }
  func.func @transform_5(%arg0: i32, %arg1: i32) -> (i32, i32) {
    %c0_i32 = arith.constant 0 : i32
    %c0_i32_0 = arith.constant 0 : i32
    return %arg0, %c0_i32 : i32, i32
  }
}

</mosaic_0001>

<llo_original>
// kernel: tpu_custom_call.1
$region0: #{tpu_custom_call.1}
  #allocation0 [shape = 'u32[]', space=smem, size = 0x4, offset = 0x4, fixed_abs, tag = 'smem constant byte address 0x4 - core index']
  #allocation1 [shape = 'u32[144,128]{1,0:T(1,128)}', space=vmem, size = 0x12000, scoped, tag = 'internal scratch']
  #allocation2 [shape = 'f32[16,128]{1,0:T(8,128)}', space=vmem, size = 0x2000, scoped, tag = 'scratch operand']
  #allocation3 [shape = 'f32[1]{0:T(128)S(6)}', space=smem, size = 0x200, scoped, tag = 'scoped memory for tpu_custom_call.1']
  %s0 = inlined_call_operand.hbm [shape: bf16[16,256], index: 0, kind: input, shape index: {}]
  %s1 = inlined_call_operand.hbm [shape: bf16[256,128], index: 1, kind: input, shape index: {}]
  %s2 = inlined_call_operand.vmem [shape: f32[1,128], index: 2, kind: input, shape index: {}]
  %s3 = inlined_call_operand.<no memory space> [shape: f32[1], index: 3, kind: input, shape index: {}]
  %s4 = inlined_call_operand.vmem [shape: bf16[16,128], index: 4, kind: input, shape index: {}]
  %s5 = inlined_call_operand.hbm [shape: f32[16,128], index: 5, kind: output, shape index: {}]
  %s6 = sld [smem:[#allocation0]]
  $region46: #{tpu_custom_call.1} parent=0
    _
  %s8 = ssub.s32 1, %s6
  %s9 = scalar_select 0, %s8, %s6
  %10 = sst [smem:[#allocation3]] %s3
  $region1: #{tpu_custom_call.1} parent=0
    #allocation4 [shape = 'u8[8192]{0}', space=vmem, size = 0x2000, scoped, tag = 'input window, operand 0, single buffered']
    #allocation5 [shape = 's32[1]{0}', space=sflag, size = 0x4, scoped, tag = 'scoped memory for tpu_custom_call.1']
    #allocation6 [shape = 's32[1]{0}', space=sflag, size = 0x4, scoped, tag = 'scoped memory for tpu_custom_call.1']
    #allocation7 [shape = 'u8[65536]{0}', space=vmem, size = 0x10000, scoped, tag = 'input window, operand 1, single buffered']
    #allocation8 [shape = 's32[1]{0}', space=sflag, size = 0x4, scoped, tag = 'scoped memory for tpu_custom_call.1']
    #allocation9 [shape = 'u8[8192]{0}', space=vmem, size = 0x2000, scoped, tag = 'output window, operand 0, single buffered']
    %11 = vsyncpa [#allocation5], 0
    %12 = vsyncpa [#allocation8], 0
    %13 = vsyncpa [#allocation6], 0
    // Predicated region
    $region2: #{tpu_custom_call.1} parent=1 // pred_check
      _
    $region3: #{tpu_custom_call.1} parent=1 // pred_check_branch
      %15 = sbr.rel (0) target = $region5
    $region4: #{tpu_custom_call.1} parent=1 // pred_region
      %s17 = ssub.s32 256, 256
      %18 = vsyncadd [#allocation5], %s17
      %s19 = sshll.u32 [#allocation4], 4
      %s20 = int_to_ptr.vmem [resolvable:$true] %s19
      %25 = dma.hbm_to_vmem [thread:$0]  %s0, 256, %s20, [#allocation5], 128, 128, 8
    $region5: #{tpu_custom_call.1} parent=1 // pred_fallthru
      _
    // Predicated region
    $region6: #{tpu_custom_call.1} parent=1 // pred_check
      _
    $region7: #{tpu_custom_call.1} parent=1 // pred_check_branch
      %27 = sbr.rel (0) target = $region9
    $region8: #{tpu_custom_call.1} parent=1 // pred_region
      %s29 = ssub.s32 2048, 2048
      %30 = vsyncadd [#allocation8], %s29
      %s31 = sshll.u32 [#allocation7], 4
      %s32 = int_to_ptr.vmem [resolvable:$true] %s31
      %37 = dma.hbm_to_vmem [thread:$0]  %s1, 2048, %s32, [#allocation8], 64, 64, 4
    $region9: #{tpu_custom_call.1} parent=1 // pred_fallthru
      _
    // Predicated region
    $region10: #{tpu_custom_call.1} parent=1 // pred_check
      _
    $region11: #{tpu_custom_call.1} parent=1 // pred_check_branch
      %39 = sbr.rel (0) target = $region13
    $region12: #{tpu_custom_call.1} parent=1 // pred_region
      _
    $region13: #{tpu_custom_call.1} parent=1 // pred_fallthru
      _
    // Predicated region
    $region14: #{tpu_custom_call.1} parent=1 // pred_check
      _
    $region15: #{tpu_custom_call.1} parent=1 // pred_check_branch
      %41 = sbr.rel (0) target = $region17
    $region16: #{tpu_custom_call.1} parent=1 // pred_region
      _
    $region17: #{tpu_custom_call.1} parent=1 // pred_fallthru
      _
    // Predicated region
    $region18: #{tpu_custom_call.1} parent=1 // pred_check
      _
    $region19: #{tpu_custom_call.1} parent=1 // pred_check_branch
      %43 = sbr.rel (0) target = $region21
    $region20: #{tpu_custom_call.1} parent=1 // pred_region
      _
    $region21: #{tpu_custom_call.1} parent=1 // pred_fallthru
      _
    // Predicated region
    $region22: #{tpu_custom_call.1} parent=1 // pred_check
      _
    $region23: #{tpu_custom_call.1} parent=1 // pred_check_branch
      %45 = sbr.rel (0) target = $region25
    $region24: #{tpu_custom_call.1} parent=1 // pred_region
      %46 = dma.done [#allocation5], 256
    $region25: #{tpu_custom_call.1} parent=1 // pred_fallthru
      _
    // Predicated region
    $region26: #{tpu_custom_call.1} parent=1 // pred_check
      _
    $region27: #{tpu_custom_call.1} parent=1 // pred_check_branch
      %48 = sbr.rel (0) target = $region29
    $region28: #{tpu_custom_call.1} parent=1 // pred_region
      %49 = dma.done [#allocation8], 2048
    $region29: #{tpu_custom_call.1} parent=1 // pred_fallthru
      _
    %p51 = scmp.eq.s32.totalorder 0, 0
    // Predicated region
    $region30: #{tpu_custom_call.1} parent=1 // pred_check
      %p52 = pneg %p51
    $region31: #{tpu_custom_call.1} parent=1 // pred_check_branch
      %54 = sbr.rel (%p52) target = $region33
    $region32: #{tpu_custom_call.1} parent=1 // pred_region
      %55 = vst [vmem:[#allocation2] sm:$0xff] 0.0
      %56 = vst [vmem:[#allocation2 + $0x8] sm:$0xff] 0.0
    $region33: #{tpu_custom_call.1} parent=1 // pred_fallthru
      _
    %v57 = vld [vmem:[#allocation2] sm:$0xff]
    %v58 = vld [vmem:[#allocation2 + $0x8] sm:$0xff]
    %v59 = vld [vmem:[#allocation4] sm:$0xff]
    %v60 = vld [vmem:[#allocation4 + $0x8] sm:$0xff]
    %v61 = vld [vmem:[#allocation7] sm:$0xf]
    %v62 = vld [vmem:[#allocation7 + $0x4] sm:$0xf]
    %v63 = vld [vmem:[#allocation7 + $0x8] sm:$0xf]
    %v64 = vld [vmem:[#allocation7 + $0xc] sm:$0xf]
    %v65 = vld [vmem:[#allocation7 + $0x10] sm:$0xf]
    %v66 = vld [vmem:[#allocation7 + $0x14] sm:$0xf]
    %v67 = vld [vmem:[#allocation7 + $0x18] sm:$0xf]
    %v68 = vld [vmem:[#allocation7 + $0x1c] sm:$0xf]
    %v69 = vld [vmem:[#allocation7 + $0x20] sm:$0xf]
    %v70 = vld [vmem:[#allocation7 + $0x24] sm:$0xf]
    %v71 = vld [vmem:[#allocation7 + $0x28] sm:$0xf]
    %v72 = vld [vmem:[#allocation7 + $0x2c] sm:$0xf]
    %v73 = vld [vmem:[#allocation7 + $0x30] sm:$0xf]
    %v74 = vld [vmem:[#allocation7 + $0x34] sm:$0xf]
    %v75 = vld [vmem:[#allocation7 + $0x38] sm:$0xf]
    %v76 = vld [vmem:[#allocation7 + $0x3c] sm:$0xf]
    %v77 = vld [vmem:[#allocation7 + $0x40] sm:$0xf]
    %v78 = vld [vmem:[#allocation7 + $0x44] sm:$0xf]
    %v79 = vld [vmem:[#allocation7 + $0x48] sm:$0xf]
    %v80 = vld [vmem:[#allocation7 + $0x4c] sm:$0xf]
    %v81 = vld [vmem:[#allocation7 + $0x50] sm:$0xf]
    %v82 = vld [vmem:[#allocation7 + $0x54] sm:$0xf]
    %v83 = vld [vmem:[#allocation7 + $0x58] sm:$0xf]
    %v84 = vld [vmem:[#allocation7 + $0x5c] sm:$0xf]
    %v85 = vld [vmem:[#allocation7 + $0x60] sm:$0xf]
    %v86 = vld [vmem:[#allocation7 + $0x64] sm:$0xf]
    %v87 = vld [vmem:[#allocation7 + $0x68] sm:$0xf]
    %v88 = vld [vmem:[#allocation7 + $0x6c] sm:$0xf]
    %v89 = vld [vmem:[#allocation7 + $0x70] sm:$0xf]
    %v90 = vld [vmem:[#allocation7 + $0x74] sm:$0xf]
    %v91 = vld [vmem:[#allocation7 + $0x78] sm:$0xf]
    %v92 = vld [vmem:[#allocation7 + $0x7c] sm:$0xf]
    %v95 = vunpack.c.l.b16 %v59
    %v96 = vunpack.c.h.b16 %v59
    %v97 = vunpack.c.l.b16 %v60
    %v98 = vunpack.c.h.b16 %v60
    %v99 = vpack.c.b16 %v97, %v95
    %v100 = vpack.c.b16 %v98, %v96
    %v135 = vunpack.c.l.b16 %v61
    %v136 = vunpack.c.l.b16 %v62
    %v137 = vunpack.c.l.b16 %v63
    %v138 = vunpack.c.l.b16 %v64
    %v139 = vunpack.c.l.b16 %v65
    %v140 = vunpack.c.l.b16 %v66
    %v141 = vunpack.c.l.b16 %v67
    %v142 = vunpack.c.l.b16 %v68
    %v143 = vunpack.c.l.b16 %v69
    %v144 = vunpack.c.l.b16 %v70
    %v145 = vunpack.c.l.b16 %v71
    %v146 = vunpack.c.l.b16 %v72
    %v147 = vunpack.c.l.b16 %v73
    %v148 = vunpack.c.l.b16 %v74
    %v149 = vunpack.c.l.b16 %v75
    %v150 = vunpack.c.l.b16 %v76
    %v151 = vunpack.c.l.b16 %v77
    %v152 = vunpack.c.l.b16 %v78
    %v153 = vunpack.c.l.b16 %v79
    %v154 = vunpack.c.l.b16 %v80
    %v155 = vunpack.c.l.b16 %v81
    %v156 = vunpack.c.l.b16 %v82
    %v157 = vunpack.c.l.b16 %v83
    %v158 = vunpack.c.l.b16 %v84
    %v159 = vunpack.c.l.b16 %v85
    %v160 = vunpack.c.l.b16 %v86
    %v161 = vunpack.c.l.b16 %v87
    %v162 = vunpack.c.l.b16 %v88
    %v163 = vunpack.c.l.b16 %v89
    %v164 = vunpack.c.l.b16 %v90
    %v165 = vunpack.c.l.b16 %v91
    %v166 = vunpack.c.l.b16 %v92
    %v167 = vpack.c.b16 %v136, %v135
    %v168 = vpack.c.b16 %v138, %v137
    %v169 = vpack.c.b16 %v140, %v139
    %v170 = vpack.c.b16 %v142, %v141
    %v171 = vpack.c.b16 %v144, %v143
    %v172 = vpack.c.b16 %v146, %v145
    %v173 = vpack.c.b16 %v148, %v147
    %v174 = vpack.c.b16 %v150, %v149
    %v175 = vpack.c.b16 %v152, %v151
    %v176 = vpack.c.b16 %v154, %v153
    %v177 = vpack.c.b16 %v156, %v155
    %v178 = vpack.c.b16 %v158, %v157
    %v179 = vpack.c.b16 %v160, %v159
    %v180 = vpack.c.b16 %v162, %v161
    %v181 = vpack.c.b16 %v164, %v163
    %v182 = vpack.c.b16 %v166, %v165
    %199 = vmatprep.subr.bf16.mxu0 0
    %200 = vmatpush1.bf16.msra.mxu0 %v167
    %201 = vmatprep.subr.bf16.mxu0 0
    %202 = vmatpush1.bf16.msra.mxu0 %v168
    %203 = vmatprep.subr.bf16.mxu0 0
    %204 = vmatpush1.bf16.msra.mxu0 %v169
    %205 = vmatprep.subr.bf16.mxu0 0
    %206 = vmatpush1.bf16.msra.mxu0 %v170
    %207 = vmatprep.subr.bf16.mxu0 0
    %208 = vmatpush1.bf16.msra.mxu0 %v171
    %209 = vmatprep.subr.bf16.mxu0 0
    %210 = vmatpush1.bf16.msra.mxu0 %v172
    %211 = vmatprep.subr.bf16.mxu0 0
    %212 = vmatpush1.bf16.msra.mxu0 %v173
    %213 = vmatprep.subr.bf16.mxu0 0
    %214 = vmatpush1.bf16.msra.mxu0 %v174
    %215 = vmatprep.subr.bf16.mxu0 0
    %216 = vmatpush1.bf16.msra.mxu0 %v175
    %217 = vmatprep.subr.bf16.mxu0 0
    %218 = vmatpush1.bf16.msra.mxu0 %v176
    %219 = vmatprep.subr.bf16.mxu0 0
    %220 = vmatpush1.bf16.msra.mxu0 %v177
    %221 = vmatprep.subr.bf16.mxu0 0
    %222 = vmatpush1.bf16.msra.mxu0 %v178
    %223 = vmatprep.subr.bf16.mxu0 0
    %224 = vmatpush1.bf16.msra.mxu0 %v179
    %225 = vmatprep.subr.bf16.mxu0 0
    %226 = vmatpush1.bf16.msra.mxu0 %v180
    %227 = vmatprep.subr.bf16.mxu0 0
    %228 = vmatpush1.bf16.msra.mxu0 %v181
    %229 = vmatprep.subr.bf16.mxu0 0
    %230 = vmatpush1.bf16.msra.mxu0 %v182
    %231 = vmatprep.mubr.bf16.mxu0 %v100
    %232 = vmatmul.mubr.bf16.gmra.mrb[0].mxu0 %v99
    %v233 = vpop.f32.mrb[0].mxu0
    %v234 = vadd.f32 0.0, %v233
    %v235 = vpop.f32.mrb[0].mxu0
    %v236 = vpop.f32.mrb[0].mxu0
    %v237 = vadd.f32 0.0, %v236
    %v238 = vpop.f32.mrb[0].mxu0
    %239 = vdwg.mxu0
    %v240 = vadd.f32 %v57, %v234
    %v241 = vadd.f32 %v58, %v237
    %242 = vst [vmem:[#allocation2] sm:$0xff] %v240
    %243 = vst [vmem:[#allocation2 + $0x8] sm:$0xff] %v241
    // Predicated region
    $region34: #{tpu_custom_call.1} parent=1 // pred_check
      %p244 = pneg %p51
    $region35: #{tpu_custom_call.1} parent=1 // pred_check_branch
      %246 = sbr.rel (%p244) target = $region37
    $region36: #{tpu_custom_call.1} parent=1 // pred_region
      %v247 = vld [vmem:[#allocation2] sm:$0xff]
      %v248 = vld [vmem:[#allocation2 + $0x8] sm:$0xff]
      %v249 = vld [vmem:[%s2] sm:$0x1]
      %v251 = vlaneseq
      %v252 = vshrl.u32 %v251, 7
      %v253 = vsub.s32 0, %v252
      %v254 = vrot.slane %v249, %v253
      %v256 = vadd.f32 %v247, %v254
      %v257 = vadd.f32 %v248, %v254
      %s258 = sld [smem:[#allocation3]]
      %vm259 = vcmp.ge.f32.partialorder %v256, 0.0
      %vm260 = vcmp.ge.f32.partialorder %v257, 0.0
      %v261 = vstv %s258
      %v262 = vmul.f32 %v261, %v256
      %v263 = vmul.f32 %v261, %v257
      %v264 = vsel %vm259, %v256, %v262
      %v265 = vsel %vm260, %v257, %v263
      %v266 = vld [vmem:[%s4] sm:$0xf]
      %v267 = vld [vmem:[%s4 + $0x4] sm:$0xf]
      %v268 = vunpack.c.l.bf16 %v266
      %v269 = vunpack.c.l.bf16 %v267
      %v270 = vadd.f32 %v264, %v268
      %v271 = vadd.f32 %v265, %v269
      %272 = vst [vmem:[#allocation9] sm:$0xff] %v270
      %273 = vst [vmem:[#allocation9 + $0x8] sm:$0xff] %v271
    $region37: #{tpu_custom_call.1} parent=1 // pred_fallthru
      _
    // Predicated region
    $region38: #{tpu_custom_call.1} parent=1 // pred_check
      _
    $region39: #{tpu_custom_call.1} parent=1 // pred_check_branch
      %275 = sbr.rel (0) target = $region41
    $region40: #{tpu_custom_call.1} parent=1 // pred_region
      %s277 = ssub.s32 256, 256
      %278 = vsyncadd [#allocation6], %s277
      %s279 = sshll.u32 [#allocation9], 4
      %s280 = int_to_ptr.vmem [resolvable:$true] %s279
      %285 = dma.vmem_to_hbm [thread:$0]  %s280, 256, %s5, [#allocation6], 128, 128, 8
    $region41: #{tpu_custom_call.1} parent=1 // pred_fallthru
      _
    // Predicated region
    $region42: #{tpu_custom_call.1} parent=1 // pred_check
      _
    $region43: #{tpu_custom_call.1} parent=1 // pred_check_branch
      %287 = sbr.rel (0) target = $region45
    $region44: #{tpu_custom_call.1} parent=1 // pred_region
      %288 = dma.done [#allocation6], 256
    $region45: #{tpu_custom_call.1} parent=1 // pred_fallthru
      _
    %289 = vsyncpa [#allocation5], 1
    %290 = vsyncpa [#allocation8], 1
    %291 = vsyncpa [#allocation6], 1

</llo_original>
